<compile_context>
chip_gen: v7x
topology: tpu7x:2x2x1
jax: 0.10.0
libtpu: 0.0.40
codegen_flags: <defaults>
</compile_context>

<pallas_src>
import functools

import jax
import jax.numpy as jnp
from jax.experimental import pallas as pl
from jax.experimental.pallas import tpu as pltpu

LANE = 128
SUBLANE_BF16 = 16   # bf16 packs two rows per 32-bit sublane -> (16, 128) tiles


def _round_up(x, m):
    return ((x + m - 1) // m) * m


# --------------------------------------------------------------------------- #
# Kernel: fused 3-layer MLP on one (bt, d_in) batch tile.
# bf16 MXU matmuls with f32 accumulation; f32 bias adds + ReLU on the VPU.
# --------------------------------------------------------------------------- #
def _mlp_kernel(x_ref, w1_ref, b1_ref, w2_ref, b2_ref, w3_ref, b3_ref, o_ref):
    x = x_ref[...]                                               # (bt, d_in) bf16
    h = jnp.dot(x, w1_ref[...], preferred_element_type=jnp.float32)
    h = jnp.maximum(h + b1_ref[...], 0.0)                        # f32 bias + ReLU
    h = jnp.dot(h.astype(w2_ref.dtype), w2_ref[...],
                preferred_element_type=jnp.float32)
    h = jnp.maximum(h + b2_ref[...], 0.0)
    o = jnp.dot(h.astype(w3_ref.dtype), w3_ref[...],
                preferred_element_type=jnp.float32)
    o_ref[...] = o + b3_ref[...]                                 # (bt, n_act) f32


# --------------------------------------------------------------------------- #
# Parameters
# --------------------------------------------------------------------------- #
def init_params(key, input_dims, fc1_dims, fc2_dims, n_actions):
    """nn.Linear-style init: U(-1/sqrt(fan_in), 1/sqrt(fan_in)). W is (in, out)."""
    def linear(k, fan_in, fan_out):
        kw, kb = jax.random.split(k)
        bound = 1.0 / jnp.sqrt(jnp.float32(fan_in))
        w = jax.random.uniform(kw, (fan_in, fan_out), jnp.float32, -bound, bound)
        b = jax.random.uniform(kb, (fan_out,), jnp.float32, -bound, bound)
        return w, b

    k1, k2, k3 = jax.random.split(key, 3)
    w1, b1 = linear(k1, input_dims, fc1_dims)
    w2, b2 = linear(k2, fc1_dims, fc2_dims)
    w3, b3 = linear(k3, fc2_dims, n_actions)
    return (w1, b1, w2, b2, w3, b3)


def pack_params(params, dtype=jnp.bfloat16):
    """One-time packing (off the hot path).

    Hidden dims are zero-padded up to the next multiple of 128 (lane-dense
    intermediate activations, aligned MXU passes); input_dims and n_actions are
    left unpadded so the kernel consumes raw observations and emits exactly
    (B, n_actions).  Weights -> bf16, biases stay f32 (added post-dot).
    """
    w1, b1, w2, b2, w3, b3 = params
    d_in, h1 = w1.shape
    _, h2 = w2.shape
    _, n_act = w3.shape
    h1p = _round_up(h1, LANE)
    h2p = _round_up(h2, LANE)

    w1p = jnp.zeros((d_in, h1p), jnp.float32).at[:, :h1].set(w1).astype(dtype)
    w2p = jnp.zeros((h1p, h2p), jnp.float32).at[:h1, :h2].set(w2).astype(dtype)
    w3p = jnp.zeros((h2p, n_act), jnp.float32).at[:h2, :].set(w3).astype(dtype)
    b1p = jnp.zeros((1, h1p), jnp.float32).at[0, :h1].set(b1)
    b2p = jnp.zeros((1, h2p), jnp.float32).at[0, :h2].set(b2)
    b3p = b3.reshape(1, n_act).astype(jnp.float32)

    packed = (w1p, b1p, w2p, b2p, w3p, b3p)
    meta = (d_in, n_act)
    return packed, meta


# --------------------------------------------------------------------------- #
# Wrappers
# --------------------------------------------------------------------------- #
@functools.partial(jax.jit, static_argnames=("meta", "batch_tile"))
def policy_forward_batch(observations, packed, meta, batch_tile=None):
    """observations: anything reshapeable to (B, input_dims). Returns (B, n_actions) f32."""
    w1p, b1p, w2p, b2p, w3p, b3p = packed
    d_in, n_act = meta
    h1p = w1p.shape[1]
    h2p = w3p.shape[0]

    obs = jnp.asarray(observations, jnp.float32).reshape(-1, d_in)
    b = obs.shape[0]
    x = obs.astype(jnp.bfloat16)                       # halve HBM->VMEM DMA per tile

    # ---- batch tiling policy ----
    if batch_tile is None:
        if b <= 512:
            bt = _round_up(max(b, SUBLANE_BF16), SUBLANE_BF16)   # one grid step
            bp = bt
        else:
            bt = 256                                   # fill 256-wide MXU (v6e/v7x)
            bp = _round_up(b, 2 * bt)                  # even #tiles for v7x 2 TCs
    else:
        bt = _round_up(batch_tile, SUBLANE_BF16)
        bp = _round_up(b, bt)

    if bp != b:
        x = jnp.pad(x, ((0, bp - b), (0, 0)))          # batch-only pad (tiny)

    out = pl.pallas_call(
        _mlp_kernel,
        out_shape=jax.ShapeDtypeStruct((bp, n_act), jnp.float32),
        grid=(bp // bt,),
        in_specs=[
            pl.BlockSpec((bt, d_in), lambda i: (i, 0)),       # activations (unpadded lanes)
            pl.BlockSpec((d_in, h1p), lambda i: (0, 0)),      # weights/biases: constant
            pl.BlockSpec((1, h1p), lambda i: (0, 0)),         #   index_map -> staged into
            pl.BlockSpec((h1p, h2p), lambda i: (0, 0)),       #   VMEM once, resident
            pl.BlockSpec((1, h2p), lambda i: (0, 0)),         #   across all grid steps
            pl.BlockSpec((h2p, n_act), lambda i: (0, 0)),
            pl.BlockSpec((1, n_act), lambda i: (0, 0)),
        ],
        out_specs=pl.BlockSpec((bt, n_act), lambda i: (i, 0)),
        compiler_params=pltpu.CompilerParams(
            dimension_semantics=("parallel",)),               # megacore split on v7x
    )(x, w1p, b1p, w2p, b2p, w3p, b3p)

    return out[:b]


def policy_forward(observation, packed, meta):
    """Single observation (original PyTorch semantics). Returns (n_actions,) f32."""
    d_in, _ = meta
    state = jnp.asarray(observation, jnp.float32).reshape(d_in)
    return policy_forward_batch(state[None, :], packed, meta=meta)[0]


# --------------------------------------------------------------------------- #
# Demo + correctness check
# --------------------------------------------------------------------------- #
if __name__ == "__main__":
    input_dims, fc1_dims, fc2_dims, n_actions = 32, 64, 32, 8

    key = jax.random.PRNGKey(0)
    k_params, k_obs = jax.random.split(key)
    params = init_params(k_params, input_dims, fc1_dims, fc2_dims, n_actions)
    packed, meta = pack_params(params)                 # bf16 weights, f32 biases

    # Batched RL-style forward: 256 environments, each a (4, 8) board -> 32 features.
    B = 256
    obs_batch = jax.random.normal(k_obs, (B, 4, 8), dtype=jnp.float32)
    logits = policy_forward_batch(obs_batch, packed, meta=meta)     # grid=(1,)
    jax.block_until_ready(logits)
    assert logits.shape == (B, n_actions)

    # Multi-tile path (exercises pipelined grid + resident weights).
    logits_tiled = policy_forward_batch(obs_batch, packed, meta=meta, batch_tile=64)
    jax.block_until_ready(logits_tiled)

    # Single-observation path (mirrors PolicyNetwork.forward exactly).
    single = policy_forward(obs_batch[0], packed, meta)
    jax.block_until_ready(single)
    assert single.shape == (n_actions,)

    # ---------------- references ----------------
    w1, b1, w2, b2, w3, b3 = params
    flat = obs_batch.reshape(B, input_dims)

    def ref_f32(x2d):
        h = jnp.maximum(x2d @ w1 + b1, 0.0)
        h = jnp.maximum(h @ w2 + b2, 0.0)
        return h @ w3 + b3

    def ref_bf16(x2d):
        bf = jnp.bfloat16
        h = jnp.maximum(jnp.dot(x2d.astype(bf), w1.astype(bf),
                                preferred_element_type=jnp.float32) + b1, 0.0)
        h = jnp.maximum(jnp.dot(h.astype(bf), w2.astype(bf),
                                preferred_element_type=jnp.float32) + b2, 0.0)
        return jnp.dot(h.astype(bf), w3.astype(bf),
                       preferred_element_type=jnp.float32) + b3

    assert jnp.allclose(logits, ref_bf16(flat), atol=1e-3, rtol=1e-3)   # precision-matched
    assert jnp.allclose(logits, ref_f32(flat), atol=5e-2, rtol=5e-2)    # vs pure f32 math
    assert jnp.allclose(logits_tiled, logits, atol=1e-5, rtol=1e-5)     # tilings agree
    assert jnp.allclose(single, logits[0], atol=1e-5, rtol=1e-5)        # batch/single agree

    print("KERNEL_OK")
</pallas_src>

<mosaic_0001>
module attributes {stable_mosaic.version = 11 : i64} {
  func.func @_mlp_kernel(%arg0: i32, %arg1: memref<256x32xbf16, #tpu.memory_space<vmem>>, %arg2: memref<32x128xbf16, #tpu.memory_space<vmem>>, %arg3: memref<1x128xf32, #tpu.memory_space<vmem>>, %arg4: memref<128x128xbf16, #tpu.memory_space<vmem>>, %arg5: memref<1x128xf32, #tpu.memory_space<vmem>>, %arg6: memref<128x8xbf16, #tpu.memory_space<vmem>>, %arg7: memref<1x8xf32, #tpu.memory_space<vmem>>, %arg8: memref<256x8xf32, #tpu.memory_space<vmem>>) attributes {dimension_semantics = [#tpu.dimension_semantics<parallel>], iteration_bounds = array<i64: 1>, scalar_prefetch = 0 : i64, scratch_operands = 0 : i64, tpu.core_type = #tpu.core_type<tc>, window_params = [{transform_indices = @transform_0, window_bounds = array<i64: 256, 32>}, {pipeline_mode = #tpu.pipeline_mode<synchronous>, transform_indices = @transform_1, window_bounds = array<i64: 32, 128>}, {pipeline_mode = #tpu.pipeline_mode<synchronous>, transform_indices = @transform_2, window_bounds = array<i64: 1, 128>}, {pipeline_mode = #tpu.pipeline_mode<synchronous>, transform_indices = @transform_3, window_bounds = array<i64: 128, 128>}, {pipeline_mode = #tpu.pipeline_mode<synchronous>, transform_indices = @transform_4, window_bounds = array<i64: 1, 128>}, {pipeline_mode = #tpu.pipeline_mode<synchronous>, transform_indices = @transform_5, window_bounds = array<i64: 128, 8>}, {pipeline_mode = #tpu.pipeline_mode<synchronous>, transform_indices = @transform_6, window_bounds = array<i64: 1, 8>}, {transform_indices = @transform_7, window_bounds = array<i64: 256, 8>}]} {
    %c0 = arith.constant 0 : index
    %c0_0 = arith.constant 0 : index
    %0 = vector.load %arg1[%c0, %c0_0] : memref<256x32xbf16, #tpu.memory_space<vmem>>, vector<256x32xbf16>
    %c0_1 = arith.constant 0 : index
    %c0_2 = arith.constant 0 : index
    %1 = vector.load %arg2[%c0_1, %c0_2] : memref<32x128xbf16, #tpu.memory_space<vmem>>, vector<32x128xbf16>
    %cst = arith.constant dense<0.000000e+00> : vector<256x128xf32>
    %2 = tpu.matmul %0, %1, %cst {dimension_numbers = #tpu.dot_dimension_numbers<[1], [0], [0], [1], [0, 0, 1, 1], [], []>} : vector<256x32xbf16>, vector<32x128xbf16>, vector<256x128xf32> -> vector<256x128xf32>
    %c0_3 = arith.constant 0 : index
    %c0_4 = arith.constant 0 : index
    %3 = vector.load %arg3[%c0_3, %c0_4] : memref<1x128xf32, #tpu.memory_space<vmem>>, vector<1x128xf32>
    %4 = vector.broadcast %3 : vector<1x128xf32> to vector<256x128xf32>
    %5 = arith.addf %2, %4 : vector<256x128xf32>
    %cst_5 = arith.constant 0.000000e+00 : f32
    %6 = vector.broadcast %cst_5 : f32 to vector<256x128xf32>
    %7 = arith.maximumf %5, %6 : vector<256x128xf32>
    %8 = arith.truncf %7 : vector<256x128xf32> to vector<256x128xbf16>
    %c0_6 = arith.constant 0 : index
    %c0_7 = arith.constant 0 : index
    %9 = vector.load %arg4[%c0_6, %c0_7] : memref<128x128xbf16, #tpu.memory_space<vmem>>, vector<128x128xbf16>
    %cst_8 = arith.constant dense<0.000000e+00> : vector<256x128xf32>
    %10 = tpu.matmul %8, %9, %cst_8 {dimension_numbers = #tpu.dot_dimension_numbers<[1], [0], [0], [1], [0, 0, 1, 1], [], []>} : vector<256x128xbf16>, vector<128x128xbf16>, vector<256x128xf32> -> vector<256x128xf32>
    %c0_9 = arith.constant 0 : index
    %c0_10 = arith.constant 0 : index
    %11 = vector.load %arg5[%c0_9, %c0_10] : memref<1x128xf32, #tpu.memory_space<vmem>>, vector<1x128xf32>
    %12 = vector.broadcast %11 : vector<1x128xf32> to vector<256x128xf32>
    %13 = arith.addf %10, %12 : vector<256x128xf32>
    %cst_11 = arith.constant 0.000000e+00 : f32
    %14 = vector.broadcast %cst_11 : f32 to vector<256x128xf32>
    %15 = arith.maximumf %13, %14 : vector<256x128xf32>
    %16 = arith.truncf %15 : vector<256x128xf32> to vector<256x128xbf16>
    %c0_12 = arith.constant 0 : index
    %c0_13 = arith.constant 0 : index
    %17 = vector.load %arg6[%c0_12, %c0_13] : memref<128x8xbf16, #tpu.memory_space<vmem>>, vector<128x8xbf16>
    %cst_14 = arith.constant dense<0.000000e+00> : vector<256x8xf32>
    %18 = tpu.matmul %16, %17, %cst_14 {dimension_numbers = #tpu.dot_dimension_numbers<[1], [0], [0], [1], [0, 0, 1, 1], [], []>} : vector<256x128xbf16>, vector<128x8xbf16>, vector<256x8xf32> -> vector<256x8xf32>
    %c0_15 = arith.constant 0 : index
    %c0_16 = arith.constant 0 : index
    %19 = vector.load %arg7[%c0_15, %c0_16] : memref<1x8xf32, #tpu.memory_space<vmem>>, vector<1x8xf32>
    %20 = vector.broadcast %19 : vector<1x8xf32> to vector<256x8xf32>
    %21 = arith.addf %18, %20 : vector<256x8xf32>
    %c0_17 = arith.constant 0 : index
    %c0_18 = arith.constant 0 : index
    %22 = vector.load %arg8[%c0_17, %c0_18] : memref<256x8xf32, #tpu.memory_space<vmem>>, vector<256x8xf32>
    tpu.vector_store %arg8[%c0_17, %c0_18], %21 {strides = array<i32>} : memref<256x8xf32, #tpu.memory_space<vmem>>, vector<256x8xf32>,
    return
  }
  func.func @transform_0(%arg0: i32) -> (i32, i32) {
    %c0_i32 = arith.constant 0 : i32
    %c0_i32_0 = arith.constant 0 : i32
    return %arg0, %c0_i32 : i32, i32
  }
  func.func @transform_1(%arg0: i32) -> (i32, i32) {
    %c0_i32 = arith.constant 0 : i32
    %c0_i32_0 = arith.constant 0 : i32
    %c0_i32_1 = arith.constant 0 : i32
    return %c0_i32, %c0_i32_0 : i32, i32
  }
  func.func @transform_2(%arg0: i32) -> (i32, i32) {
    %c0_i32 = arith.constant 0 : i32
    %c0_i32_0 = arith.constant 0 : i32
    %c0_i32_1 = arith.constant 0 : i32
    return %c0_i32, %c0_i32_0 : i32, i32
  }
  func.func @transform_3(%arg0: i32) -> (i32, i32) {
    %c0_i32 = arith.constant 0 : i32
    %c0_i32_0 = arith.constant 0 : i32
    %c0_i32_1 = arith.constant 0 : i32
    return %c0_i32, %c0_i32_0 : i32, i32
  }
  func.func @transform_4(%arg0: i32) -> (i32, i32) {
    %c0_i32 = arith.constant 0 : i32
    %c0_i32_0 = arith.constant 0 : i32
    %c0_i32_1 = arith.constant 0 : i32
    return %c0_i32, %c0_i32_0 : i32, i32
  }
  func.func @transform_5(%arg0: i32) -> (i32, i32) {
    %c0_i32 = arith.constant 0 : i32
    %c0_i32_0 = arith.constant 0 : i32
    %c0_i32_1 = arith.constant 0 : i32
    return %c0_i32, %c0_i32_0 : i32, i32
  }
  func.func @transform_6(%arg0: i32) -> (i32, i32) {
    %c0_i32 = arith.constant 0 : i32
    %c0_i32_0 = arith.constant 0 : i32
    %c0_i32_1 = arith.constant 0 : i32
    return %c0_i32, %c0_i32_0 : i32, i32
  }
  func.func @transform_7(%arg0: i32) -> (i32, i32) {
    %c0_i32 = arith.constant 0 : i32
    %c0_i32_0 = arith.constant 0 : i32
    return %arg0, %c0_i32 : i32, i32
  }
}

</mosaic_0001>

<llo_original>
// kernel: policy_forward_batch.1
$region0: #{policy_forward_batch.1}
  #allocation0 [shape = 'u32[]', space=smem, size = 0x4, offset = 0x4, fixed_abs, tag = 'smem constant byte address 0x4 - core index']
  #allocation1 [shape = 'u32[144,128]{1,0:T(1,128)}', space=vmem, size = 0x12000, scoped, tag = 'internal scratch']
  %s0 = inlined_call_operand.vmem [shape: bf16[256,32], index: 0, kind: input, shape index: {}]
  %s1 = inlined_call_operand.vmem [shape: bf16[32,128], index: 1, kind: input, shape index: {}]
  %s2 = inlined_call_operand.vmem [shape: f32[1,128], index: 2, kind: input, shape index: {}]
  %s3 = inlined_call_operand.vmem [shape: bf16[128,128], index: 3, kind: input, shape index: {}]
  %s4 = inlined_call_operand.vmem [shape: f32[1,128], index: 4, kind: input, shape index: {}]
  %s5 = inlined_call_operand.vmem [shape: bf16[128,8], index: 5, kind: input, shape index: {}]
  %s6 = inlined_call_operand.vmem [shape: f32[1,8], index: 6, kind: input, shape index: {}]
  %s7 = inlined_call_operand.vmem [shape: f32[256,8], index: 7, kind: output, shape index: {}]
  %s8 = sld [smem:[#allocation0]]
  $region38: #{policy_forward_batch.1} parent=0
    _
  %s10 = ssub.s32 1, %s8
  %s11 = scalar_select 0, %s10, %s8
  // Predicated region
  $region2: #{policy_forward_batch.1} parent=0 // pred_check
    _
  $region3: #{policy_forward_batch.1} parent=0 // pred_check_branch
    %13 = sbr.rel (0) target = $region5
  $region4: #{policy_forward_batch.1} parent=0 // pred_region
    _
  $region5: #{policy_forward_batch.1} parent=0 // pred_fallthru
    _
  // Predicated region
  $region6: #{policy_forward_batch.1} parent=0 // pred_check
    _
  $region7: #{policy_forward_batch.1} parent=0 // pred_check_branch
    %15 = sbr.rel (0) target = $region9
  $region8: #{policy_forward_batch.1} parent=0 // pred_region
    _
  $region9: #{policy_forward_batch.1} parent=0 // pred_fallthru
    _
  // Predicated region
  $region10: #{policy_forward_batch.1} parent=0 // pred_check
    _
  $region11: #{policy_forward_batch.1} parent=0 // pred_check_branch
    %17 = sbr.rel (0) target = $region13
  $region12: #{policy_forward_batch.1} parent=0 // pred_region
    _
  $region13: #{policy_forward_batch.1} parent=0 // pred_fallthru
    _
  // Predicated region
  $region14: #{policy_forward_batch.1} parent=0 // pred_check
    _
  $region15: #{policy_forward_batch.1} parent=0 // pred_check_branch
    %19 = sbr.rel (0) target = $region17
  $region16: #{policy_forward_batch.1} parent=0 // pred_region
    _
  $region17: #{policy_forward_batch.1} parent=0 // pred_fallthru
    _
  // Predicated region
  $region18: #{policy_forward_batch.1} parent=0 // pred_check
    _
  $region19: #{policy_forward_batch.1} parent=0 // pred_check_branch
    %21 = sbr.rel (0) target = $region21
  $region20: #{policy_forward_batch.1} parent=0 // pred_region
    _
  $region21: #{policy_forward_batch.1} parent=0 // pred_fallthru
    _
  // Predicated region
  $region22: #{policy_forward_batch.1} parent=0 // pred_check
    _
  $region23: #{policy_forward_batch.1} parent=0 // pred_check_branch
    %23 = sbr.rel (0) target = $region25
  $region24: #{policy_forward_batch.1} parent=0 // pred_region
    _
  $region25: #{policy_forward_batch.1} parent=0 // pred_fallthru
    _
  // Predicated region
  $region26: #{policy_forward_batch.1} parent=0 // pred_check
    _
  $region27: #{policy_forward_batch.1} parent=0 // pred_check_branch
    %25 = sbr.rel (0) target = $region29
  $region28: #{policy_forward_batch.1} parent=0 // pred_region
    _
  $region29: #{policy_forward_batch.1} parent=0 // pred_fallthru
    _
  %v27 = vld [vmem:[%s0] sm:$0xf]
  %v28 = vld [vmem:[%s0 + $0x4] sm:$0xf]
  %v29 = vld [vmem:[%s0 + $0x8] sm:$0xf]
  %v30 = vld [vmem:[%s0 + $0xc] sm:$0xf]
  %v31 = vld [vmem:[%s0 + $0x10] sm:$0xf]
  %v32 = vld [vmem:[%s0 + $0x14] sm:$0xf]
  %v33 = vld [vmem:[%s0 + $0x18] sm:$0xf]
  %v34 = vld [vmem:[%s0 + $0x1c] sm:$0xf]
  %v35 = vld [vmem:[%s0 + $0x20] sm:$0xf]
  %v36 = vld [vmem:[%s0 + $0x24] sm:$0xf]
  %v37 = vld [vmem:[%s0 + $0x28] sm:$0xf]
  %v38 = vld [vmem:[%s0 + $0x2c] sm:$0xf]
  %v39 = vld [vmem:[%s0 + $0x30] sm:$0xf]
  %v40 = vld [vmem:[%s0 + $0x34] sm:$0xf]
  %v41 = vld [vmem:[%s0 + $0x38] sm:$0xf]
  %v42 = vld [vmem:[%s0 + $0x3c] sm:$0xf]
  %v43 = vld [vmem:[%s0 + $0x40] sm:$0xf]
  %v44 = vld [vmem:[%s0 + $0x44] sm:$0xf]
  %v45 = vld [vmem:[%s0 + $0x48] sm:$0xf]
  %v46 = vld [vmem:[%s0 + $0x4c] sm:$0xf]
  %v47 = vld [vmem:[%s0 + $0x50] sm:$0xf]
  %v48 = vld [vmem:[%s0 + $0x54] sm:$0xf]
  %v49 = vld [vmem:[%s0 + $0x58] sm:$0xf]
  %v50 = vld [vmem:[%s0 + $0x5c] sm:$0xf]
  %v51 = vld [vmem:[%s0 + $0x60] sm:$0xf]
  %v52 = vld [vmem:[%s0 + $0x64] sm:$0xf]
  %v53 = vld [vmem:[%s0 + $0x68] sm:$0xf]
  %v54 = vld [vmem:[%s0 + $0x6c] sm:$0xf]
  %v55 = vld [vmem:[%s0 + $0x70] sm:$0xf]
  %v56 = vld [vmem:[%s0 + $0x74] sm:$0xf]
  %v57 = vld [vmem:[%s0 + $0x78] sm:$0xf]
  %v58 = vld [vmem:[%s0 + $0x7c] sm:$0xf]
  %v59 = vld [vmem:[%s1] sm:$0xf]
  %v60 = vld [vmem:[%s1 + $0x4] sm:$0xf]
  %v61 = vld [vmem:[%s1 + $0x8] sm:$0xf]
  %v62 = vld [vmem:[%s1 + $0xc] sm:$0xf]
  %v63 = vld [vmem:[%s2] sm:$0x1]
  %v65 = vlaneseq
  %v66 = vshrl.u32 %v65, 7
  %v67 = vsub.s32 0, %v66
  %v68 = vrot.slane %v63, %v67
  %v102 = vunpack.c.l.b16 %v27
  %v103 = vunpack.c.l.b16 %v28
  %v104 = vunpack.c.l.b16 %v29
  %v105 = vunpack.c.l.b16 %v30
  %v106 = vunpack.c.l.b16 %v31
  %v107 = vunpack.c.l.b16 %v32
  %v108 = vunpack.c.l.b16 %v33
  %v109 = vunpack.c.l.b16 %v34
  %v110 = vunpack.c.l.b16 %v35
  %v111 = vunpack.c.l.b16 %v36
  %v112 = vunpack.c.l.b16 %v37
  %v113 = vunpack.c.l.b16 %v38
  %v114 = vunpack.c.l.b16 %v39
  %v115 = vunpack.c.l.b16 %v40
  %v116 = vunpack.c.l.b16 %v41
  %v117 = vunpack.c.l.b16 %v42
  %v118 = vunpack.c.l.b16 %v43
  %v119 = vunpack.c.l.b16 %v44
  %v120 = vunpack.c.l.b16 %v45
  %v121 = vunpack.c.l.b16 %v46
  %v122 = vunpack.c.l.b16 %v47
  %v123 = vunpack.c.l.b16 %v48
  %v124 = vunpack.c.l.b16 %v49
  %v125 = vunpack.c.l.b16 %v50
  %v126 = vunpack.c.l.b16 %v51
  %v127 = vunpack.c.l.b16 %v52
  %v128 = vunpack.c.l.b16 %v53
  %v129 = vunpack.c.l.b16 %v54
  %v130 = vunpack.c.l.b16 %v55
  %v131 = vunpack.c.l.b16 %v56
  %v132 = vunpack.c.l.b16 %v57
  %v133 = vunpack.c.l.b16 %v58
  %v134 = vpack.c.b16 %v103, %v102
  %v135 = vpack.c.b16 %v105, %v104
  %v136 = vpack.c.b16 %v107, %v106
  %v137 = vpack.c.b16 %v109, %v108
  %v138 = vpack.c.b16 %v111, %v110
  %v139 = vpack.c.b16 %v113, %v112
  %v140 = vpack.c.b16 %v115, %v114
  %v141 = vpack.c.b16 %v117, %v116
  %v142 = vpack.c.b16 %v119, %v118
  %v143 = vpack.c.b16 %v121, %v120
  %v144 = vpack.c.b16 %v123, %v122
  %v145 = vpack.c.b16 %v125, %v124
  %v146 = vpack.c.b16 %v127, %v126
  %v147 = vpack.c.b16 %v129, %v128
  %v148 = vpack.c.b16 %v131, %v130
  %v149 = vpack.c.b16 %v133, %v132
  %v154 = vunpack.c.l.b16 %v59
  %v155 = vunpack.c.l.b16 %v60
  %v156 = vunpack.c.l.b16 %v61
  %v157 = vunpack.c.l.b16 %v62
  %v158 = vpack.c.b16 %v155, %v154
  %v159 = vpack.c.b16 %v157, %v156
  %vm162 = vcmask 261120
  %v164 = vsel %vm162, %v134, 0
  %v167 = vsel %vm162, %v135, 0
  %v170 = vsel %vm162, %v136, 0
  %v173 = vsel %vm162, %v137, 0
  %v176 = vsel %vm162, %v138, 0
  %v179 = vsel %vm162, %v139, 0
  %v182 = vsel %vm162, %v140, 0
  %v185 = vsel %vm162, %v141, 0
  %v188 = vsel %vm162, %v142, 0
  %v191 = vsel %vm162, %v143, 0
  %v194 = vsel %vm162, %v144, 0
  %v197 = vsel %vm162, %v145, 0
  %v200 = vsel %vm162, %v146, 0
  %v203 = vsel %vm162, %v147, 0
  %v206 = vsel %vm162, %v148, 0
  %v209 = vsel %vm162, %v149, 0
  %211 = vmatprep.subr.bf16.mxu0 0
  %212 = vmatpush1.bf16.msra.mxu0 %v158
  %213 = vmatprep.subr.bf16.mxu0 0
  %214 = vmatpush1.bf16.msra.mxu0 %v159
  %215 = vmatprep.subr.bf16.mxu0 0
  %216 = vmatpush1.bf16.msra.mxu0 0
  %217 = vmatprep.subr.bf16.mxu0 0
  %218 = vmatpush1.bf16.msra.mxu0 0
  %219 = vmatprep.subr.bf16.mxu0 0
  %220 = vmatpush1.bf16.msra.mxu0 0
  %221 = vmatprep.subr.bf16.mxu0 0
  %222 = vmatpush1.bf16.msra.mxu0 0
  %223 = vmatprep.subr.bf16.mxu0 0
  %224 = vmatpush1.bf16.msra.mxu0 0
  %225 = vmatprep.subr.bf16.mxu0 0
  %226 = vmatpush1.bf16.msra.mxu0 0
  %227 = vmatprep.subr.bf16.mxu0 0
  %228 = vmatpush1.bf16.msra.mxu0 0
  %229 = vmatprep.subr.bf16.mxu0 0
  %230 = vmatpush1.bf16.msra.mxu0 0
  %231 = vmatprep.subr.bf16.mxu0 0
  %232 = vmatpush1.bf16.msra.mxu0 0
  %233 = vmatprep.subr.bf16.mxu0 0
  %234 = vmatpush1.bf16.msra.mxu0 0
  %235 = vmatprep.subr.bf16.mxu0 0
  %236 = vmatpush1.bf16.msra.mxu0 0
  %237 = vmatprep.subr.bf16.mxu0 0
  %238 = vmatpush1.bf16.msra.mxu0 0
  %239 = vmatprep.subr.bf16.mxu0 0
  %240 = vmatpush1.bf16.msra.mxu0 0
  %241 = vmatprep.subr.bf16.mxu0 0
  %242 = vmatpush1.bf16.msra.mxu0 0
  %243 = vmatprep.mubr.bf16.mxu0 0
  %244 = vmatmul.mubr.bf16.gmra.mrb[0].mxu0 %v164
  %v245 = vpop.f32.mrb[0].mxu0
  %v246 = vadd.f32 %v68, %v245
  %v247 = vpop.f32.mrb[0].mxu0
  %v248 = vpop.f32.mrb[0].mxu0
  %v249 = vadd.f32 %v68, %v248
  %v250 = vpop.f32.mrb[0].mxu0
  %251 = vmatprep.mubr.bf16.mxu0 0
  %252 = vmatmul.mubr.bf16.gmra.mrb[0].mxu0 %v167
  %v253 = vpop.f32.mrb[0].mxu0
  %v254 = vadd.f32 %v68, %v253
  %v255 = vpop.f32.mrb[0].mxu0
  %v256 = vpop.f32.mrb[0].mxu0
  %v257 = vadd.f32 %v68, %v256
  %v258 = vpop.f32.mrb[0].mxu0
  %259 = vmatprep.mubr.bf16.mxu0 0
  %260 = vmatmul.mubr.bf16.gmra.mrb[0].mxu0 %v170
  %v261 = vpop.f32.mrb[0].mxu0
  %v262 = vadd.f32 %v68, %v261
  %v263 = vpop.f32.mrb[0].mxu0
  %v264 = vpop.f32.mrb[0].mxu0
  %v265 = vadd.f32 %v68, %v264
  %v266 = vpop.f32.mrb[0].mxu0
  %267 = vmatprep.mubr.bf16.mxu0 0
  %268 = vmatmul.mubr.bf16.gmra.mrb[0].mxu0 %v173
  %v269 = vpop.f32.mrb[0].mxu0
  %v270 = vadd.f32 %v68, %v269
  %v271 = vpop.f32.mrb[0].mxu0
  %v272 = vpop.f32.mrb[0].mxu0
  %v273 = vadd.f32 %v68, %v272
  %v274 = vpop.f32.mrb[0].mxu0
  %275 = vmatprep.mubr.bf16.mxu0 0
  %276 = vmatmul.mubr.bf16.gmra.mrb[0].mxu0 %v176
  %v277 = vpop.f32.mrb[0].mxu0
  %v278 = vadd.f32 %v68, %v277
  %v279 = vpop.f32.mrb[0].mxu0
  %v280 = vpop.f32.mrb[0].mxu0
  %v281 = vadd.f32 %v68, %v280
  %v282 = vpop.f32.mrb[0].mxu0
  %283 = vmatprep.mubr.bf16.mxu0 0
  %284 = vmatmul.mubr.bf16.gmra.mrb[0].mxu0 %v179
  %v285 = vpop.f32.mrb[0].mxu0
  %v286 = vadd.f32 %v68, %v285
  %v287 = vpop.f32.mrb[0].mxu0
  %v288 = vpop.f32.mrb[0].mxu0
  %v289 = vadd.f32 %v68, %v288
  %v290 = vpop.f32.mrb[0].mxu0
  %291 = vmatprep.mubr.bf16.mxu0 0
  %292 = vmatmul.mubr.bf16.gmra.mrb[0].mxu0 %v182
  %v293 = vpop.f32.mrb[0].mxu0
  %v294 = vadd.f32 %v68, %v293
  %v295 = vpop.f32.mrb[0].mxu0
  %v296 = vpop.f32.mrb[0].mxu0
  %v297 = vadd.f32 %v68, %v296
  %v298 = vpop.f32.mrb[0].mxu0
  %299 = vmatprep.mubr.bf16.mxu0 0
  %300 = vmatmul.mubr.bf16.gmra.mrb[0].mxu0 %v185
  %v301 = vpop.f32.mrb[0].mxu0
  %v302 = vadd.f32 %v68, %v301
  %v303 = vpop.f32.mrb[0].mxu0
  %v304 = vpop.f32.mrb[0].mxu0
  %v305 = vadd.f32 %v68, %v304
  %v306 = vpop.f32.mrb[0].mxu0
  %307 = vmatprep.mubr.bf16.mxu0 0
  %308 = vmatmul.mubr.bf16.gmra.mrb[0].mxu0 %v188
  %v309 = vpop.f32.mrb[0].mxu0
  %v310 = vadd.f32 %v68, %v309
  %v311 = vpop.f32.mrb[0].mxu0
  %v312 = vpop.f32.mrb[0].mxu0
  %v313 = vadd.f32 %v68, %v312
  %v314 = vpop.f32.mrb[0].mxu0
  %315 = vmatprep.mubr.bf16.mxu0 0
  %316 = vmatmul.mubr.bf16.gmra.mrb[0].mxu0 %v191
  %v317 = vpop.f32.mrb[0].mxu0
  %v318 = vadd.f32 %v68, %v317
  %v319 = vpop.f32.mrb[0].mxu0
  %v320 = vpop.f32.mrb[0].mxu0
  %v321 = vadd.f32 %v68, %v320
  %v322 = vpop.f32.mrb[0].mxu0
  %323 = vmatprep.mubr.bf16.mxu0 0
  %324 = vmatmul.mubr.bf16.gmra.mrb[0].mxu0 %v194
  %v325 = vpop.f32.mrb[0].mxu0
  %v326 = vadd.f32 %v68, %v325
  %v327 = vpop.f32.mrb[0].mxu0
  %v328 = vpop.f32.mrb[0].mxu0
  %v329 = vadd.f32 %v68, %v328
  %v330 = vpop.f32.mrb[0].mxu0
  %331 = vmatprep.mubr.bf16.mxu0 0
  %332 = vmatmul.mubr.bf16.gmra.mrb[0].mxu0 %v197
  %v333 = vpop.f32.mrb[0].mxu0
  %v334 = vadd.f32 %v68, %v333
  %v335 = vpop.f32.mrb[0].mxu0
  %v336 = vpop.f32.mrb[0].mxu0
  %v337 = vadd.f32 %v68, %v336
  %v338 = vpop.f32.mrb[0].mxu0
  %339 = vmatprep.mubr.bf16.mxu0 0
  %340 = vmatmul.mubr.bf16.gmra.mrb[0].mxu0 %v200
  %v341 = vpop.f32.mrb[0].mxu0
  %v342 = vadd.f32 %v68, %v341
  %v343 = vpop.f32.mrb[0].mxu0
  %v344 = vpop.f32.mrb[0].mxu0
  %v345 = vadd.f32 %v68, %v344
  %v346 = vpop.f32.mrb[0].mxu0
  %347 = vmatprep.mubr.bf16.mxu0 0
  %348 = vmatmul.mubr.bf16.gmra.mrb[0].mxu0 %v203
  %v349 = vpop.f32.mrb[0].mxu0
  %v350 = vadd.f32 %v68, %v349
  %v351 = vpop.f32.mrb[0].mxu0
  %v352 = vpop.f32.mrb[0].mxu0
  %v353 = vadd.f32 %v68, %v352
  %v354 = vpop.f32.mrb[0].mxu0
  %355 = vmatprep.mubr.bf16.mxu0 0
  %356 = vmatmul.mubr.bf16.gmra.mrb[0].mxu0 %v206
  %v357 = vpop.f32.mrb[0].mxu0
  %v358 = vadd.f32 %v68, %v357
  %v359 = vpop.f32.mrb[0].mxu0
  %v360 = vpop.f32.mrb[0].mxu0
  %v361 = vadd.f32 %v68, %v360
  %v362 = vpop.f32.mrb[0].mxu0
  %363 = vmatprep.mubr.bf16.mxu0 0
  %364 = vmatmul.mubr.bf16.gmra.mrb[0].mxu0 %v209
  %v365 = vpop.f32.mrb[0].mxu0
  %v366 = vadd.f32 %v68, %v365
  %v367 = vpop.f32.mrb[0].mxu0
  %v368 = vpop.f32.mrb[0].mxu0
  %v369 = vadd.f32 %v68, %v368
  %v370 = vpop.f32.mrb[0].mxu0
  %371 = vdwg.mxu0
  %v372 = vmax.f32 %v246, 0.0
  %v373 = vmax.f32 %v249, 0.0
  %v374 = vmax.f32 %v254, 0.0
  %v375 = vmax.f32 %v257, 0.0
  %v376 = vmax.f32 %v262, 0.0
  %v377 = vmax.f32 %v265, 0.0
  %v378 = vmax.f32 %v270, 0.0
  %v379 = vmax.f32 %v273, 0.0
  %v380 = vmax.f32 %v278, 0.0
  %v381 = vmax.f32 %v281, 0.0
  %v382 = vmax.f32 %v286, 0.0
  %v383 = vmax.f32 %v289, 0.0
  %v384 = vmax.f32 %v294, 0.0
  %v385 = vmax.f32 %v297, 0.0
  %v386 = vmax.f32 %v302, 0.0
  %v387 = vmax.f32 %v305, 0.0
  %v388 = vmax.f32 %v310, 0.0
  %v389 = vmax.f32 %v313, 0.0
  %v390 = vmax.f32 %v318, 0.0
  %v391 = vmax.f32 %v321, 0.0
  %v392 = vmax.f32 %v326, 0.0
  %v393 = vmax.f32 %v329, 0.0
  %v394 = vmax.f32 %v334, 0.0
  %v395 = vmax.f32 %v337, 0.0
  %v396 = vmax.f32 %v342, 0.0
  %v397 = vmax.f32 %v345, 0.0
  %v398 = vmax.f32 %v350, 0.0
  %v399 = vmax.f32 %v353, 0.0
  %v400 = vmax.f32 %v358, 0.0
  %v401 = vmax.f32 %v361, 0.0
  %v402 = vmax.f32 %v366, 0.0
  %v403 = vmax.f32 %v369, 0.0
  %v404 = vpack.c.bf16 %v373, %v372
  %v405 = vpack.c.bf16 %v375, %v374
  %v406 = vpack.c.bf16 %v377, %v376
  %v407 = vpack.c.bf16 %v379, %v378
  %v408 = vpack.c.bf16 %v381, %v380
  %v409 = vpack.c.bf16 %v383, %v382
  %v410 = vpack.c.bf16 %v385, %v384
  %v411 = vpack.c.bf16 %v387, %v386
  %v412 = vpack.c.bf16 %v389, %v388
  %v413 = vpack.c.bf16 %v391, %v390
  %v414 = vpack.c.bf16 %v393, %v392
  %v415 = vpack.c.bf16 %v395, %v394
  %v416 = vpack.c.bf16 %v397, %v396
  %v417 = vpack.c.bf16 %v399, %v398
  %v418 = vpack.c.bf16 %v401, %v400
  %v419 = vpack.c.bf16 %v403, %v402
  %v420 = vld [vmem:[%s3] sm:$0xf]
  %v421 = vld [vmem:[%s3 + $0x4] sm:$0xf]
  %v422 = vld [vmem:[%s3 + $0x8] sm:$0xf]
  %v423 = vld [vmem:[%s3 + $0xc] sm:$0xf]
  %v424 = vld [vmem:[%s3 + $0x10] sm:$0xf]
  %v425 = vld [vmem:[%s3 + $0x14] sm:$0xf]
  %v426 = vld [vmem:[%s3 + $0x18] sm:$0xf]
  %v427 = vld [vmem:[%s3 + $0x1c] sm:$0xf]
  %v428 = vld [vmem:[%s3 + $0x20] sm:$0xf]
  %v429 = vld [vmem:[%s3 + $0x24] sm:$0xf]
  %v430 = vld [vmem:[%s3 + $0x28] sm:$0xf]
  %v431 = vld [vmem:[%s3 + $0x2c] sm:$0xf]
  %v432 = vld [vmem:[%s3 + $0x30] sm:$0xf]
  %v433 = vld [vmem:[%s3 + $0x34] sm:$0xf]
  %v434 = vld [vmem:[%s3 + $0x38] sm:$0xf]
  %v435 = vld [vmem:[%s3 + $0x3c] sm:$0xf]
  %v436 = vld [vmem:[%s4] sm:$0x1]
  %v438 = vlaneseq
  %v439 = vshrl.u32 %v438, 7
  %v440 = vsub.s32 0, %v439
  %v441 = vrot.slane %v436, %v440
  %v459 = vunpack.c.l.b16 %v420
  %v460 = vunpack.c.l.b16 %v421
  %v461 = vunpack.c.l.b16 %v422
  %v462 = vunpack.c.l.b16 %v423
  %v463 = vunpack.c.l.b16 %v424
  %v464 = vunpack.c.l.b16 %v425
  %v465 = vunpack.c.l.b16 %v426
  %v466 = vunpack.c.l.b16 %v427
  %v467 = vunpack.c.l.b16 %v428
  %v468 = vunpack.c.l.b16 %v429
  %v469 = vunpack.c.l.b16 %v430
  %v470 = vunpack.c.l.b16 %v431
  %v471 = vunpack.c.l.b16 %v432
  %v472 = vunpack.c.l.b16 %v433
  %v473 = vunpack.c.l.b16 %v434
  %v474 = vunpack.c.l.b16 %v435
  %v475 = vpack.c.b16 %v460, %v459
  %v476 = vpack.c.b16 %v462, %v461
  %v477 = vpack.c.b16 %v464, %v463
  %v478 = vpack.c.b16 %v466, %v465
  %v479 = vpack.c.b16 %v468, %v467
  %v480 = vpack.c.b16 %v470, %v469
  %v481 = vpack.c.b16 %v472, %v471
  %v482 = vpack.c.b16 %v474, %v473
  %491 = vmatprep.subr.bf16.mxu0 0
  %492 = vmatpush1.bf16.msra.mxu0 %v475
  %493 = vmatprep.subr.bf16.mxu0 0
  %494 = vmatpush1.bf16.msra.mxu0 %v476
  %495 = vmatprep.subr.bf16.mxu0 0
  %496 = vmatpush1.bf16.msra.mxu0 %v477
  %497 = vmatprep.subr.bf16.mxu0 0
  %498 = vmatpush1.bf16.msra.mxu0 %v478
  %499 = vmatprep.subr.bf16.mxu0 0
  %500 = vmatpush1.bf16.msra.mxu0 %v479
  %501 = vmatprep.subr.bf16.mxu0 0
  %502 = vmatpush1.bf16.msra.mxu0 %v480
  %503 = vmatprep.subr.bf16.mxu0 0
  %504 = vmatpush1.bf16.msra.mxu0 %v481
  %505 = vmatprep.subr.bf16.mxu0 0
  %506 = vmatpush1.bf16.msra.mxu0 %v482
  %507 = vmatprep.subr.bf16.mxu0 0
  %508 = vmatpush1.bf16.msra.mxu0 0
  %509 = vmatprep.subr.bf16.mxu0 0
  %510 = vmatpush1.bf16.msra.mxu0 0
  %511 = vmatprep.subr.bf16.mxu0 0
  %512 = vmatpush1.bf16.msra.mxu0 0
  %513 = vmatprep.subr.bf16.mxu0 0
  %514 = vmatpush1.bf16.msra.mxu0 0
  %515 = vmatprep.subr.bf16.mxu0 0
  %516 = vmatpush1.bf16.msra.mxu0 0
  %517 = vmatprep.subr.bf16.mxu0 0
  %518 = vmatpush1.bf16.msra.mxu0 0
  %519 = vmatprep.subr.bf16.mxu0 0
  %520 = vmatpush1.bf16.msra.mxu0 0
  %521 = vmatprep.subr.bf16.mxu0 0
  %522 = vmatpush1.bf16.msra.mxu0 0
  %523 = vmatprep.mubr.bf16.mxu0 0
  %524 = vmatmul.mubr.bf16.gmra.mrb[0].mxu0 %v404
  %v525 = vpop.f32.mrb[0].mxu0
  %v526 = vadd.f32 %v441, %v525
  %v527 = vpop.f32.mrb[0].mxu0
  %v528 = vpop.f32.mrb[0].mxu0
  %v529 = vadd.f32 %v441, %v528
  %v530 = vpop.f32.mrb[0].mxu0
  %531 = vmatprep.mubr.bf16.mxu0 0
  %532 = vmatmul.mubr.bf16.gmra.mrb[0].mxu0 %v405
  %v533 = vpop.f32.mrb[0].mxu0
  %v534 = vadd.f32 %v441, %v533
  %v535 = vpop.f32.mrb[0].mxu0
  %v536 = vpop.f32.mrb[0].mxu0
  %v537 = vadd.f32 %v441, %v536
  %v538 = vpop.f32.mrb[0].mxu0
  %539 = vmatprep.mubr.bf16.mxu0 0
  %540 = vmatmul.mubr.bf16.gmra.mrb[0].mxu0 %v406
  %v541 = vpop.f32.mrb[0].mxu0
  %v542 = vadd.f32 %v441, %v541
  %v543 = vpop.f32.mrb[0].mxu0
  %v544 = vpop.f32.mrb[0].mxu0
  %v545 = vadd.f32 %v441, %v544
  %v546 = vpop.f32.mrb[0].mxu0
  %547 = vmatprep.mubr.bf16.mxu0 0
  %548 = vmatmul.mubr.bf16.gmra.mrb[0].mxu0 %v407
  %v549 = vpop.f32.mrb[0].mxu0
  %v550 = vadd.f32 %v441, %v549
  %v551 = vpop.f32.mrb[0].mxu0
  %v552 = vpop.f32.mrb[0].mxu0
  %v553 = vadd.f32 %v441, %v552
  %v554 = vpop.f32.mrb[0].mxu0
  %555 = vmatprep.mubr.bf16.mxu0 0
  %556 = vmatmul.mubr.bf16.gmra.mrb[0].mxu0 %v408
  %v557 = vpop.f32.mrb[0].mxu0
  %v558 = vadd.f32 %v441, %v557
  %v559 = vpop.f32.mrb[0].mxu0
  %v560 = vpop.f32.mrb[0].mxu0
  %v561 = vadd.f32 %v441, %v560
  %v562 = vpop.f32.mrb[0].mxu0
  %563 = vmatprep.mubr.bf16.mxu0 0
  %564 = vmatmul.mubr.bf16.gmra.mrb[0].mxu0 %v409
  %v565 = vpop.f32.mrb[0].mxu0
  %v566 = vadd.f32 %v441, %v565
  %v567 = vpop.f32.mrb[0].mxu0
  %v568 = vpop.f32.mrb[0].mxu0
  %v569 = vadd.f32 %v441, %v568
  %v570 = vpop.f32.mrb[0].mxu0
  %571 = vmatprep.mubr.bf16.mxu0 0
  %572 = vmatmul.mubr.bf16.gmra.mrb[0].mxu0 %v410
  %v573 = vpop.f32.mrb[0].mxu0
  %v574 = vadd.f32 %v441, %v573
  %v575 = vpop.f32.mrb[0].mxu0
  %v576 = vpop.f32.mrb[0].mxu0
  %v577 = vadd.f32 %v441, %v576
  %v578 = vpop.f32.mrb[0].mxu0
  %579 = vmatprep.mubr.bf16.mxu0 0
  %580 = vmatmul.mubr.bf16.gmra.mrb[0].mxu0 %v411
  %v581 = vpop.f32.mrb[0].mxu0
  %v582 = vadd.f32 %v441, %v581
  %v583 = vpop.f32.mrb[0].mxu0
  %v584 = vpop.f32.mrb[0].mxu0
  %v585 = vadd.f32 %v441, %v584
  %v586 = vpop.f32.mrb[0].mxu0
  %587 = vmatprep.mubr.bf16.mxu0 0
  %588 = vmatmul.mubr.bf16.gmra.mrb[0].mxu0 %v412
  %v589 = vpop.f32.mrb[0].mxu0
  %v590 = vadd.f32 %v441, %v589
  %v591 = vpop.f32.mrb[0].mxu0
  %v592 = vpop.f32.mrb[0].mxu0
  %v593 = vadd.f32 %v441, %v592
  %v594 = vpop.f32.mrb[0].mxu0
  %595 = vmatprep.mubr.bf16.mxu0 0
  %596 = vmatmul.mubr.bf16.gmra.mrb[0].mxu0 %v413
  %v597 = vpop.f32.mrb[0].mxu0
  %v598 = vadd.f32 %v441, %v597
  %v599 = vpop.f32.mrb[0].mxu0
  %v600 = vpop.f32.mrb[0].mxu0
  %v601 = vadd.f32 %v441, %v600
  %v602 = vpop.f32.mrb[0].mxu0
  %603 = vmatprep.mubr.bf16.mxu0 0
  %604 = vmatmul.mubr.bf16.gmra.mrb[0].mxu0 %v414
  %v605 = vpop.f32.mrb[0].mxu0
  %v606 = vadd.f32 %v441, %v605
  %v607 = vpop.f32.mrb[0].mxu0
  %v608 = vpop.f32.mrb[0].mxu0
  %v609 = vadd.f32 %v441, %v608
  %v610 = vpop.f32.mrb[0].mxu0
  %611 = vmatprep.mubr.bf16.mxu0 0
  %612 = vmatmul.mubr.bf16.gmra.mrb[0].mxu0 %v415
  %v613 = vpop.f32.mrb[0].mxu0
  %v614 = vadd.f32 %v441, %v613
  %v615 = vpop.f32.mrb[0].mxu0
  %v616 = vpop.f32.mrb[0].mxu0
  %v617 = vadd.f32 %v441, %v616
  %v618 = vpop.f32.mrb[0].mxu0
  %619 = vmatprep.mubr.bf16.mxu0 0
  %620 = vmatmul.mubr.bf16.gmra.mrb[0].mxu0 %v416
  %v621 = vpop.f32.mrb[0].mxu0
  %v622 = vadd.f32 %v441, %v621
  %v623 = vpop.f32.mrb[0].mxu0
  %v624 = vpop.f32.mrb[0].mxu0
  %v625 = vadd.f32 %v441, %v624
  %v626 = vpop.f32.mrb[0].mxu0
  %627 = vmatprep.mubr.bf16.mxu0 0
  %628 = vmatmul.mubr.bf16.gmra.mrb[0].mxu0 %v417
  %v629 = vpop.f32.mrb[0].mxu0
  %v630 = vadd.f32 %v441, %v629
  %v631 = vpop.f32.mrb[0].mxu0
  %v632 = vpop.f32.mrb[0].mxu0
  %v633 = vadd.f32 %v441, %v632
  %v634 = vpop.f32.mrb[0].mxu0
  %635 = vmatprep.mubr.bf16.mxu0 0
  %636 = vmatmul.mubr.bf16.gmra.mrb[0].mxu0 %v418
  %v637 = vpop.f32.mrb[0].mxu0
  %v638 = vadd.f32 %v441, %v637
  %v639 = vpop.f32.mrb[0].mxu0
  %v640 = vpop.f32.mrb[0].mxu0
  %v641 = vadd.f32 %v441, %v640
  %v642 = vpop.f32.mrb[0].mxu0
  %643 = vmatprep.mubr.bf16.mxu0 0
  %644 = vmatmul.mubr.bf16.gmra.mrb[0].mxu0 %v419
  %v645 = vpop.f32.mrb[0].mxu0
  %v646 = vadd.f32 %v441, %v645
  %v647 = vpop.f32.mrb[0].mxu0
  %v648 = vpop.f32.mrb[0].mxu0
  %v649 = vadd.f32 %v441, %v648
  %v650 = vpop.f32.mrb[0].mxu0
  %651 = vdwg.mxu0
  %v652 = vmax.f32 %v526, 0.0
  %v653 = vmax.f32 %v529, 0.0
  %v654 = vmax.f32 %v534, 0.0
  %v655 = vmax.f32 %v537, 0.0
  %v656 = vmax.f32 %v542, 0.0
  %v657 = vmax.f32 %v545, 0.0
  %v658 = vmax.f32 %v550, 0.0
  %v659 = vmax.f32 %v553, 0.0
  %v660 = vmax.f32 %v558, 0.0
  %v661 = vmax.f32 %v561, 0.0
  %v662 = vmax.f32 %v566, 0.0
  %v663 = vmax.f32 %v569, 0.0
  %v664 = vmax.f32 %v574, 0.0
  %v665 = vmax.f32 %v577, 0.0
  %v666 = vmax.f32 %v582, 0.0
  %v667 = vmax.f32 %v585, 0.0
  %v668 = vmax.f32 %v590, 0.0
  %v669 = vmax.f32 %v593, 0.0
  %v670 = vmax.f32 %v598, 0.0
  %v671 = vmax.f32 %v601, 0.0
  %v672 = vmax.f32 %v606, 0.0
  %v673 = vmax.f32 %v609, 0.0
  %v674 = vmax.f32 %v614, 0.0
  %v675 = vmax.f32 %v617, 0.0
  %v676 = vmax.f32 %v622, 0.0
  %v677 = vmax.f32 %v625, 0.0
  %v678 = vmax.f32 %v630, 0.0
  %v679 = vmax.f32 %v633, 0.0
  %v680 = vmax.f32 %v638, 0.0
  %v681 = vmax.f32 %v641, 0.0
  %v682 = vmax.f32 %v646, 0.0
  %v683 = vmax.f32 %v649, 0.0
  %v684 = vpack.c.bf16 %v653, %v652
  %v685 = vpack.c.bf16 %v655, %v654
  %v686 = vpack.c.bf16 %v657, %v656
  %v687 = vpack.c.bf16 %v659, %v658
  %v688 = vpack.c.bf16 %v661, %v660
  %v689 = vpack.c.bf16 %v663, %v662
  %v690 = vpack.c.bf16 %v665, %v664
  %v691 = vpack.c.bf16 %v667, %v666
  %v692 = vpack.c.bf16 %v669, %v668
  %v693 = vpack.c.bf16 %v671, %v670
  %v694 = vpack.c.bf16 %v673, %v672
  %v695 = vpack.c.bf16 %v675, %v674
  %v696 = vpack.c.bf16 %v677, %v676
  %v697 = vpack.c.bf16 %v679, %v678
  %v698 = vpack.c.bf16 %v681, %v680
  %v699 = vpack.c.bf16 %v683, %v682
  %v700 = vld [vmem:[%s5] sm:$0xf]
  %v701 = vld [vmem:[%s5 + $0x4] sm:$0xf]
  %v702 = vld [vmem:[%s5 + $0x8] sm:$0xf]
  %v703 = vld [vmem:[%s5 + $0xc] sm:$0xf]
  %v704 = vld [vmem:[%s5 + $0x10] sm:$0xf]
  %v705 = vld [vmem:[%s5 + $0x14] sm:$0xf]
  %v706 = vld [vmem:[%s5 + $0x18] sm:$0xf]
  %v707 = vld [vmem:[%s5 + $0x1c] sm:$0xf]
  %v708 = vld [vmem:[%s5 + $0x20] sm:$0xf]
  %v709 = vld [vmem:[%s5 + $0x24] sm:$0xf]
  %v710 = vld [vmem:[%s5 + $0x28] sm:$0xf]
  %v711 = vld [vmem:[%s5 + $0x2c] sm:$0xf]
  %v712 = vld [vmem:[%s5 + $0x30] sm:$0xf]
  %v713 = vld [vmem:[%s5 + $0x34] sm:$0xf]
  %v714 = vld [vmem:[%s5 + $0x38] sm:$0xf]
  %v715 = vld [vmem:[%s5 + $0x3c] sm:$0xf]
  %v716 = vld [vmem:[%s6] sm:$0x1]
  %v718 = vlaneseq
  %v719 = vshrl.u32 %v718, 7
  %v720 = vsub.s32 0, %v719
  %v721 = vrot.slane %v716, %v720
  %v739 = vunpack.c.l.b16 %v700
  %v740 = vunpack.c.l.b16 %v701
  %v741 = vunpack.c.l.b16 %v702
  %v742 = vunpack.c.l.b16 %v703
  %v743 = vunpack.c.l.b16 %v704
  %v744 = vunpack.c.l.b16 %v705
  %v745 = vunpack.c.l.b16 %v706
  %v746 = vunpack.c.l.b16 %v707
  %v747 = vunpack.c.l.b16 %v708
  %v748 = vunpack.c.l.b16 %v709
  %v749 = vunpack.c.l.b16 %v710
  %v750 = vunpack.c.l.b16 %v711
  %v751 = vunpack.c.l.b16 %v712
  %v752 = vunpack.c.l.b16 %v713
  %v753 = vunpack.c.l.b16 %v714
  %v754 = vunpack.c.l.b16 %v715
  %v755 = vpack.c.b16 %v740, %v739
  %v756 = vpack.c.b16 %v742, %v741
  %v757 = vpack.c.b16 %v744, %v743
  %v758 = vpack.c.b16 %v746, %v745
  %v759 = vpack.c.b16 %v748, %v747
  %v760 = vpack.c.b16 %v750, %v749
  %v761 = vpack.c.b16 %v752, %v751
  %v762 = vpack.c.b16 %v754, %v753
  %771 = vmatprep.subr.bf16.mxu0 0
  %772 = vmatpush1.bf16.msra.mxu0 %v755
  %773 = vmatprep.subr.bf16.mxu0 0
  %774 = vmatpush1.bf16.msra.mxu0 %v756
  %775 = vmatprep.subr.bf16.mxu0 0
  %776 = vmatpush1.bf16.msra.mxu0 %v757
  %777 = vmatprep.subr.bf16.mxu0 0
  %778 = vmatpush1.bf16.msra.mxu0 %v758
  %779 = vmatprep.subr.bf16.mxu0 0
  %780 = vmatpush1.bf16.msra.mxu0 %v759
  %781 = vmatprep.subr.bf16.mxu0 0
  %782 = vmatpush1.bf16.msra.mxu0 %v760
  %783 = vmatprep.subr.bf16.mxu0 0
  %784 = vmatpush1.bf16.msra.mxu0 %v761
  %785 = vmatprep.subr.bf16.mxu0 0
  %786 = vmatpush1.bf16.msra.mxu0 %v762
  %787 = vmatprep.subr.bf16.mxu0 0
  %788 = vmatpush1.bf16.msra.mxu0 0
  %789 = vmatprep.subr.bf16.mxu0 0
  %790 = vmatpush1.bf16.msra.mxu0 0
  %791 = vmatprep.subr.bf16.mxu0 0
  %792 = vmatpush1.bf16.msra.mxu0 0
  %793 = vmatprep.subr.bf16.mxu0 0
  %794 = vmatpush1.bf16.msra.mxu0 0
  %795 = vmatprep.subr.bf16.mxu0 0
  %796 = vmatpush1.bf16.msra.mxu0 0
  %797 = vmatprep.subr.bf16.mxu0 0
  %798 = vmatpush1.bf16.msra.mxu0 0
  %799 = vmatprep.subr.bf16.mxu0 0
  %800 = vmatpush1.bf16.msra.mxu0 0
  %801 = vmatprep.subr.bf16.mxu0 0
  %802 = vmatpush1.bf16.msra.mxu0 0
  %803 = vmatprep.mubr.bf16.mxu0 0
  %804 = vmatmul.mubr.bf16.gmra.mrb[0].mxu0 %v684
  %v805 = vpop.f32.mrb[0].mxu0
  %v806 = vadd.f32 %v721, %v805
  %v807 = vpop.f32.mrb[0].mxu0
  %v808 = vpop.f32.mrb[0].mxu0
  %v809 = vadd.f32 %v721, %v808
  %v810 = vpop.f32.mrb[0].mxu0
  %811 = vmatprep.mubr.bf16.mxu0 0
  %812 = vmatmul.mubr.bf16.gmra.mrb[0].mxu0 %v685
  %v813 = vpop.f32.mrb[0].mxu0
  %v814 = vadd.f32 %v721, %v813
  %v815 = vpop.f32.mrb[0].mxu0
  %v816 = vpop.f32.mrb[0].mxu0
  %v817 = vadd.f32 %v721, %v816
  %v818 = vpop.f32.mrb[0].mxu0
  %819 = vmatprep.mubr.bf16.mxu0 0
  %820 = vmatmul.mubr.bf16.gmra.mrb[0].mxu0 %v686
  %v821 = vpop.f32.mrb[0].mxu0
  %v822 = vadd.f32 %v721, %v821
  %v823 = vpop.f32.mrb[0].mxu0
  %v824 = vpop.f32.mrb[0].mxu0
  %v825 = vadd.f32 %v721, %v824
  %v826 = vpop.f32.mrb[0].mxu0
  %827 = vmatprep.mubr.bf16.mxu0 0
  %828 = vmatmul.mubr.bf16.gmra.mrb[0].mxu0 %v687
  %v829 = vpop.f32.mrb[0].mxu0
  %v830 = vadd.f32 %v721, %v829
  %v831 = vpop.f32.mrb[0].mxu0
  %v832 = vpop.f32.mrb[0].mxu0
  %v833 = vadd.f32 %v721, %v832
  %v834 = vpop.f32.mrb[0].mxu0
  %835 = vmatprep.mubr.bf16.mxu0 0
  %836 = vmatmul.mubr.bf16.gmra.mrb[0].mxu0 %v688
  %v837 = vpop.f32.mrb[0].mxu0
  %v838 = vadd.f32 %v721, %v837
  %v839 = vpop.f32.mrb[0].mxu0
  %v840 = vpop.f32.mrb[0].mxu0
  %v841 = vadd.f32 %v721, %v840
  %v842 = vpop.f32.mrb[0].mxu0
  %843 = vmatprep.mubr.bf16.mxu0 0
  %844 = vmatmul.mubr.bf16.gmra.mrb[0].mxu0 %v689
  %v845 = vpop.f32.mrb[0].mxu0
  %v846 = vadd.f32 %v721, %v845
  %v847 = vpop.f32.mrb[0].mxu0
  %v848 = vpop.f32.mrb[0].mxu0
  %v849 = vadd.f32 %v721, %v848
  %v850 = vpop.f32.mrb[0].mxu0
  %851 = vmatprep.mubr.bf16.mxu0 0
  %852 = vmatmul.mubr.bf16.gmra.mrb[0].mxu0 %v690
  %v853 = vpop.f32.mrb[0].mxu0
  %v854 = vadd.f32 %v721, %v853
  %v855 = vpop.f32.mrb[0].mxu0
  %v856 = vpop.f32.mrb[0].mxu0
  %v857 = vadd.f32 %v721, %v856
  %v858 = vpop.f32.mrb[0].mxu0
  %859 = vmatprep.mubr.bf16.mxu0 0
  %860 = vmatmul.mubr.bf16.gmra.mrb[0].mxu0 %v691
  %v861 = vpop.f32.mrb[0].mxu0
  %v862 = vadd.f32 %v721, %v861
  %v863 = vpop.f32.mrb[0].mxu0
  %v864 = vpop.f32.mrb[0].mxu0
  %v865 = vadd.f32 %v721, %v864
  %v866 = vpop.f32.mrb[0].mxu0
  %867 = vmatprep.mubr.bf16.mxu0 0
  %868 = vmatmul.mubr.bf16.gmra.mrb[0].mxu0 %v692
  %v869 = vpop.f32.mrb[0].mxu0
  %v870 = vadd.f32 %v721, %v869
  %v871 = vpop.f32.mrb[0].mxu0
  %v872 = vpop.f32.mrb[0].mxu0
  %v873 = vadd.f32 %v721, %v872
  %v874 = vpop.f32.mrb[0].mxu0
  %875 = vmatprep.mubr.bf16.mxu0 0
  %876 = vmatmul.mubr.bf16.gmra.mrb[0].mxu0 %v693
  %v877 = vpop.f32.mrb[0].mxu0
  %v878 = vadd.f32 %v721, %v877
  %v879 = vpop.f32.mrb[0].mxu0
  %v880 = vpop.f32.mrb[0].mxu0
  %v881 = vadd.f32 %v721, %v880
  %v882 = vpop.f32.mrb[0].mxu0
  %883 = vmatprep.mubr.bf16.mxu0 0
  %884 = vmatmul.mubr.bf16.gmra.mrb[0].mxu0 %v694
  %v885 = vpop.f32.mrb[0].mxu0
  %v886 = vadd.f32 %v721, %v885
  %v887 = vpop.f32.mrb[0].mxu0
  %v888 = vpop.f32.mrb[0].mxu0
  %v889 = vadd.f32 %v721, %v888
  %v890 = vpop.f32.mrb[0].mxu0
  %891 = vmatprep.mubr.bf16.mxu0 0
  %892 = vmatmul.mubr.bf16.gmra.mrb[0].mxu0 %v695
  %v893 = vpop.f32.mrb[0].mxu0
  %v894 = vadd.f32 %v721, %v893
  %v895 = vpop.f32.mrb[0].mxu0
  %v896 = vpop.f32.mrb[0].mxu0
  %v897 = vadd.f32 %v721, %v896
  %v898 = vpop.f32.mrb[0].mxu0
  %899 = vmatprep.mubr.bf16.mxu0 0
  %900 = vmatmul.mubr.bf16.gmra.mrb[0].mxu0 %v696
  %v901 = vpop.f32.mrb[0].mxu0
  %v902 = vadd.f32 %v721, %v901
  %v903 = vpop.f32.mrb[0].mxu0
  %v904 = vpop.f32.mrb[0].mxu0
  %v905 = vadd.f32 %v721, %v904
  %v906 = vpop.f32.mrb[0].mxu0
  %907 = vmatprep.mubr.bf16.mxu0 0
  %908 = vmatmul.mubr.bf16.gmra.mrb[0].mxu0 %v697
  %v909 = vpop.f32.mrb[0].mxu0
  %v910 = vadd.f32 %v721, %v909
  %v911 = vpop.f32.mrb[0].mxu0
  %v912 = vpop.f32.mrb[0].mxu0
  %v913 = vadd.f32 %v721, %v912
  %v914 = vpop.f32.mrb[0].mxu0
  %915 = vmatprep.mubr.bf16.mxu0 0
  %916 = vmatmul.mubr.bf16.gmra.mrb[0].mxu0 %v698
  %v917 = vpop.f32.mrb[0].mxu0
  %v918 = vadd.f32 %v721, %v917
  %v919 = vpop.f32.mrb[0].mxu0
  %v920 = vpop.f32.mrb[0].mxu0
  %v921 = vadd.f32 %v721, %v920
  %v922 = vpop.f32.mrb[0].mxu0
  %923 = vmatprep.mubr.bf16.mxu0 0
  %924 = vmatmul.mubr.bf16.gmra.mrb[0].mxu0 %v699
  %v925 = vpop.f32.mrb[0].mxu0
  %v926 = vadd.f32 %v721, %v925
  %v927 = vpop.f32.mrb[0].mxu0
  %v928 = vpop.f32.mrb[0].mxu0
  %v929 = vadd.f32 %v721, %v928
  %v930 = vpop.f32.mrb[0].mxu0
  %931 = vdwg.mxu0
  %vm932 = vcmask 64512
  %933 = vst.msk [vmem:[%s7] sm:$0xff] %vm932, %v806
  %934 = vst.msk [vmem:[%s7 + $0x8] sm:$0xff] %vm932, %v809
  %935 = vst.msk [vmem:[%s7 + $0x10] sm:$0xff] %vm932, %v814
  %936 = vst.msk [vmem:[%s7 + $0x18] sm:$0xff] %vm932, %v817
  %937 = vst.msk [vmem:[%s7 + $0x20] sm:$0xff] %vm932, %v822
  %938 = vst.msk [vmem:[%s7 + $0x28] sm:$0xff] %vm932, %v825
  %939 = vst.msk [vmem:[%s7 + $0x30] sm:$0xff] %vm932, %v830
  %940 = vst.msk [vmem:[%s7 + $0x38] sm:$0xff] %vm932, %v833
  %941 = vst.msk [vmem:[%s7 + $0x40] sm:$0xff] %vm932, %v838
  %942 = vst.msk [vmem:[%s7 + $0x48] sm:$0xff] %vm932, %v841
  %943 = vst.msk [vmem:[%s7 + $0x50] sm:$0xff] %vm932, %v846
  %944 = vst.msk [vmem:[%s7 + $0x58] sm:$0xff] %vm932, %v849
  %945 = vst.msk [vmem:[%s7 + $0x60] sm:$0xff] %vm932, %v854
  %946 = vst.msk [vmem:[%s7 + $0x68] sm:$0xff] %vm932, %v857
  %947 = vst.msk [vmem:[%s7 + $0x70] sm:$0xff] %vm932, %v862
  %948 = vst.msk [vmem:[%s7 + $0x78] sm:$0xff] %vm932, %v865
  %949 = vst.msk [vmem:[%s7 + $0x80] sm:$0xff] %vm932, %v870
  %950 = vst.msk [vmem:[%s7 + $0x88] sm:$0xff] %vm932, %v873
  %951 = vst.msk [vmem:[%s7 + $0x90] sm:$0xff] %vm932, %v878
  %952 = vst.msk [vmem:[%s7 + $0x98] sm:$0xff] %vm932, %v881
  %953 = vst.msk [vmem:[%s7 + $0xa0] sm:$0xff] %vm932, %v886
  %954 = vst.msk [vmem:[%s7 + $0xa8] sm:$0xff] %vm932, %v889
  %955 = vst.msk [vmem:[%s7 + $0xb0] sm:$0xff] %vm932, %v894
  %956 = vst.msk [vmem:[%s7 + $0xb8] sm:$0xff] %vm932, %v897
  %957 = vst.msk [vmem:[%s7 + $0xc0] sm:$0xff] %vm932, %v902
  %958 = vst.msk [vmem:[%s7 + $0xc8] sm:$0xff] %vm932, %v905
  %959 = vst.msk [vmem:[%s7 + $0xd0] sm:$0xff] %vm932, %v910
  %960 = vst.msk [vmem:[%s7 + $0xd8] sm:$0xff] %vm932, %v913
  %961 = vst.msk [vmem:[%s7 + $0xe0] sm:$0xff] %vm932, %v918
  %962 = vst.msk [vmem:[%s7 + $0xe8] sm:$0xff] %vm932, %v921
  %963 = vst.msk [vmem:[%s7 + $0xf0] sm:$0xff] %vm932, %v926
  %964 = vst.msk [vmem:[%s7 + $0xf8] sm:$0xff] %vm932, %v929
  // Predicated region
  $region30: #{policy_forward_batch.1} parent=0 // pred_check
    _
  $region31: #{policy_forward_batch.1} parent=0 // pred_check_branch
    %966 = sbr.rel (0) target = $region33
  $region32: #{policy_forward_batch.1} parent=0 // pred_region
    _
  $region33: #{policy_forward_batch.1} parent=0 // pred_fallthru
    _
  // Predicated region
  $region34: #{policy_forward_batch.1} parent=0 // pred_check
    _
  $region35: #{policy_forward_batch.1} parent=0 // pred_check_branch
    %968 = sbr.rel (0) target = $region37
  $region36: #{policy_forward_batch.1} parent=0 // pred_region
    _
  $region37: #{policy_forward_batch.1} parent=0 // pred_fallthru
    _

</llo_original>
